<compile_context>
chip_gen: v7x
topology: tpu7x:2x2x1
jax: 0.10.0
libtpu: 0.0.40
codegen_flags: <defaults>
</compile_context>

<pallas_src>
import functools

import jax
import jax.numpy as jnp
from jax.experimental import pallas as pl
from jax.experimental.pallas import tpu as pltpu


def _round_up(n, m):
    return ((n + m - 1) // m) * m


def _cdiv(a, b):
    return (a + b - 1) // b


def _softplus_f32(z):
    # Matches torch.nn.Softplus(beta=1, threshold=20); min() guards the untaken
    # exp branch from overflowing.
    return jnp.where(z > 20.0, z, jnp.log1p(jnp.exp(jnp.minimum(z, 20.0))))


def _normal_kernel(x_ref, w_ref, b_ref, out_ref, *, out_f, mask_select):
    """One fused affine for both heads; softplus only on the sigma lanes."""
    z = jnp.dot(x_ref[...], w_ref[...], preferred_element_type=jnp.float32)
    z = z + b_ref[...]                                   # (TM, n_out) f32

    if mask_select:
        # out_f not 128-aligned: elementwise lane-index select keeps everything
        # lane-dense (no sub-128 slices inside the kernel).
        sp = _softplus_f32(z) + 1e-7
        col = jax.lax.broadcasted_iota(jnp.int32, z.shape, dimension=1)
        sigma_lane = jnp.logical_and(col >= out_f, col < 2 * out_f)
        out_ref[...] = jnp.where(sigma_lane, sp, z).astype(out_ref.dtype)
    else:
        # out_f multiple of 128: tile-aligned slices, EUP/VPU work only on the
        # sigma half (n_out == 2*out_f in this case, no padded lanes).
        out_ref[:, :out_f] = z[:, :out_f].astype(out_ref.dtype)
        out_ref[:, out_f:] = (_softplus_f32(z[:, out_f:]) + 1e-7).astype(out_ref.dtype)


def fuse_normal_params(w_mu, b_mu, w_sigma, b_sigma, *, compute_dtype=jnp.float32):
    """Fuse torch-style (out, in) weights into a single lane-dense operand.

    Returns (w_fused, b_fused): (in_f, n_out) in `compute_dtype`, (1, n_out) f32,
    with n_out = round_up(2*out_f, 128) (zero padded). Call this ONCE at
    parameter-build time in a real model.
    """
    out_f, _ = w_mu.shape
    two_out = 2 * out_f
    n_out = _round_up(two_out, 128)
    w = jnp.concatenate([w_mu, w_sigma], axis=0).T            # (in_f, 2*out_f)
    b = jnp.concatenate([b_mu, b_sigma], axis=0)[None, :]     # (1, 2*out_f)
    if n_out != two_out:
        w = jnp.pad(w, ((0, 0), (0, n_out - two_out)))
        b = jnp.pad(b, ((0, 0), (0, n_out - two_out)))
    return w.astype(compute_dtype), b.astype(jnp.float32)


def normal_forward_fused(x, w_fused, b_fused, out_f):
    """x: (..., in_f). w_fused: (in_f, n_out). Returns (loc, scale), (..., out_f)."""
    orig_shape = x.shape
    in_f = orig_shape[-1]
    x2 = x.reshape(-1, in_f)
    B = x2.shape[0]
    n_out = w_fused.shape[1]
    two_out = 2 * out_f

    x_bytes = x2.dtype.itemsize
    w_bytes = w_fused.dtype.itemsize
    out_bytes = x_bytes

    # ---- batch-tile sizing ----
    # Move >= ~1 MiB of HBM traffic per grid step; stay inside a ~10 MiB VMEM
    # budget (2x double-buffered x + out, plus the resident fused weight/bias),
    # which fits the default scoped-VMEM limit on every generation.
    row_io_bytes = in_f * x_bytes + n_out * out_bytes
    tm_bw = _round_up(_cdiv(1 << 20, row_io_bytes), 8)
    per_row_vmem = 2 * (in_f * x_bytes + n_out * out_bytes)
    fixed_vmem = 2 * (in_f * n_out * w_bytes + n_out * 4)
    vmem_budget = 10 << 20
    if vmem_budget - fixed_vmem >= 8 * per_row_vmem:
        tm_vmem = ((vmem_budget - fixed_vmem) // per_row_vmem) // 8 * 8
    else:
        # TODO(synk): for very large in_f/out_f add K/N grid tiling with an f32
        # VMEM accumulator instead of keeping the whole fused weight resident.
        tm_vmem = 8
    tm_target = max(256, min(4096, tm_bw))
    tm_target = min(tm_target, max(8, tm_vmem))

    # Bound padding waste: pad only to a multiple of 8, then derive the tile.
    b8 = _round_up(max(B, 1), 8)
    n_steps = _cdiv(b8, tm_target)
    if n_steps == 1 and b8 >= 16:
        n_steps = 2  # >= 2 grid steps so v7x's second TensorCore gets work
    tm = _round_up(_cdiv(b8, n_steps), 8)
    b_pad = tm * n_steps

    if b_pad != B:
        # Padded rows compute well-defined (bias-only) values, sliced away below.
        x2 = jnp.pad(x2, ((0, b_pad - B), (0, 0)))

    kernel = functools.partial(
        _normal_kernel, out_f=out_f, mask_select=(out_f % 128 != 0))

    out = pl.pallas_call(
        kernel,
        out_shape=jax.ShapeDtypeStruct((b_pad, n_out), x2.dtype),
        grid=(n_steps,),
        in_specs=[
            pl.BlockSpec((tm, in_f), lambda i: (i, 0)),       # x tile (pipelined)
            pl.BlockSpec((in_f, n_out), lambda i: (0, 0)),    # fused weight (resident)
            pl.BlockSpec((1, n_out), lambda i: (0, 0)),       # fused bias (resident)
        ],
        out_specs=pl.BlockSpec((tm, n_out), lambda i: (i, 0)),
        compiler_params=pltpu.CompilerParams(
            dimension_semantics=("parallel",),  # shard batch across TCs on v7x
        ),
        # TODO(synk): if a trace shows the x DMA still exposed for very short
        # per-step compute, add pipeline_mode=pl.Buffered(3) to the x BlockSpec.
    )(x2, w_fused, b_fused)

    loc = out[:B, :out_f].reshape(orig_shape[:-1] + (out_f,))
    scale = out[:B, out_f:two_out].reshape(orig_shape[:-1] + (out_f,))
    return loc, scale


def normal_forward(x, w_mu, b_mu, w_sigma, b_sigma):
    """Convenience wrapper taking torch-style params. Prefer fusing at init."""
    out_f = w_mu.shape[0]
    w_fused, b_fused = fuse_normal_params(
        w_mu, b_mu, w_sigma, b_sigma, compute_dtype=x.dtype)
    return normal_forward_fused(x, w_fused, b_fused, out_f)


def _init_linear_params(key, in_features, out_features):
    # deterministic init mimicking nn.Linear's U(-1/sqrt(in), 1/sqrt(in))
    k_w, k_b = jax.random.split(key)
    bound = 1.0 / jnp.sqrt(jnp.float32(in_features))
    w = jax.random.uniform(k_w, (out_features, in_features), jnp.float32,
                           minval=-bound, maxval=bound)
    b = jax.random.uniform(k_b, (out_features,), jnp.float32,
                           minval=-bound, maxval=bound)
    return w, b


if __name__ == "__main__":
    key = jax.random.PRNGKey(0)
    ks = jax.random.split(key, 7)

    def ref(x, wm, bm, ws, bs):
        loc = x @ wm.T + bm
        scale = jax.nn.softplus(x @ ws.T + bs) + 1e-7
        return loc, scale

    # --- Case 1: out_f=16 (< 128) -> lane-mask path, small batch ---
    in_features, out_features = 32, 16
    w_mu, b_mu = _init_linear_params(ks[0], in_features, out_features)
    w_sigma, b_sigma = _init_linear_params(ks[1], in_features, out_features)

    x1 = jax.random.normal(ks[2], (8, in_features), jnp.float32)
    loc1, scale1 = normal_forward(x1, w_mu, b_mu, w_sigma, b_sigma)
    jax.block_until_ready((loc1, scale1))
    rl1, rs1 = ref(x1, w_mu, b_mu, w_sigma, b_sigma)
    assert jnp.allclose(loc1, rl1, atol=1e-5, rtol=1e-5)
    assert jnp.allclose(scale1, rs1, atol=1e-5, rtol=1e-5)
    assert bool(jnp.all(scale1 > 0))

    # --- Case 2: batch not a multiple of 8 -> padding + 2 grid steps ---
    x2 = jax.random.normal(ks[3], (20, in_features), jnp.float32)
    loc2, scale2 = normal_forward(x2, w_mu, b_mu, w_sigma, b_sigma)
    jax.block_until_ready((loc2, scale2))
    rl2, rs2 = ref(x2, w_mu, b_mu, w_sigma, b_sigma)
    assert jnp.allclose(loc2, rl2, atol=1e-5, rtol=1e-5)
    assert jnp.allclose(scale2, rs2, atol=1e-5, rtol=1e-5)
    assert bool(jnp.all(scale2 > 0))

    # --- Case 3: out_f=128 (128-aligned) -> tile-aligned slice path ---
    out_f3 = 128
    w_mu3, b_mu3 = _init_linear_params(ks[4], in_features, out_f3)
    w_sig3, b_sig3 = _init_linear_params(ks[5], in_features, out_f3)
    x3 = jax.random.normal(ks[6], (16, in_features), jnp.float32)
    loc3, scale3 = normal_forward(x3, w_mu3, b_mu3, w_sig3, b_sig3)
    jax.block_until_ready((loc3, scale3))
    rl3, rs3 = ref(x3, w_mu3, b_mu3, w_sig3, b_sig3)
    assert jnp.allclose(loc3, rl3, atol=1e-5, rtol=1e-5)
    assert jnp.allclose(scale3, rs3, atol=1e-5, rtol=1e-5)
    assert bool(jnp.all(scale3 > 0))

    # --- Case 4: bf16 activations (no forced f32 upcast), loose tolerance ---
    xb = x1.astype(jnp.bfloat16)
    locb, scaleb = normal_forward(xb, w_mu, b_mu, w_sigma, b_sigma)
    jax.block_until_ready((locb, scaleb))
    wm_b = w_mu.astype(jnp.bfloat16).astype(jnp.float32)
    ws_b = w_sigma.astype(jnp.bfloat16).astype(jnp.float32)
    rlb, rsb = ref(xb.astype(jnp.float32), wm_b, b_mu, ws_b, b_sigma)
    assert locb.dtype == jnp.bfloat16 and scaleb.dtype == jnp.bfloat16
    assert jnp.allclose(locb.astype(jnp.float32), rlb, atol=3e-2, rtol=3e-2)
    assert jnp.allclose(scaleb.astype(jnp.float32), rsb, atol=3e-2, rtol=3e-2)
    assert bool(jnp.all(scaleb.astype(jnp.float32) > 0))

    print("KERNEL_OK")
</pallas_src>

<mosaic_0001>
module attributes {stable_mosaic.version = 11 : i64} {
  func.func @_normal_kernel(%arg0: i32, %arg1: memref<8x32xf32, #tpu.memory_space<vmem>>, %arg2: memref<32x128xf32, #tpu.memory_space<vmem>>, %arg3: memref<1x128xf32, #tpu.memory_space<vmem>>, %arg4: memref<8x128xf32, #tpu.memory_space<vmem>>) attributes {dimension_semantics = [#tpu.dimension_semantics<parallel>], iteration_bounds = array<i64: 1>, scalar_prefetch = 0 : i64, scratch_operands = 0 : i64, tpu.core_type = #tpu.core_type<tc>, window_params = [{transform_indices = @transform_0, window_bounds = array<i64: 8, 32>}, {pipeline_mode = #tpu.pipeline_mode<synchronous>, transform_indices = @transform_1, window_bounds = array<i64: 32, 128>}, {pipeline_mode = #tpu.pipeline_mode<synchronous>, transform_indices = @transform_2, window_bounds = array<i64: 1, 128>}, {transform_indices = @transform_3, window_bounds = array<i64: 8, 128>}]} {
    %c0 = arith.constant 0 : index
    %c0_0 = arith.constant 0 : index
    %0 = vector.load %arg1[%c0, %c0_0] : memref<8x32xf32, #tpu.memory_space<vmem>>, vector<8x32xf32>
    %c0_1 = arith.constant 0 : index
    %c0_2 = arith.constant 0 : index
    %1 = vector.load %arg2[%c0_1, %c0_2] : memref<32x128xf32, #tpu.memory_space<vmem>>, vector<32x128xf32>
    %cst = arith.constant dense<0.000000e+00> : vector<8x128xf32>
    %2 = tpu.matmul %0, %1, %cst {dimension_numbers = #tpu.dot_dimension_numbers<[1], [0], [0], [1], [0, 0, 1, 1], [], []>} : vector<8x32xf32>, vector<32x128xf32>, vector<8x128xf32> -> vector<8x128xf32>
    %c0_3 = arith.constant 0 : index
    %c0_4 = arith.constant 0 : index
    %3 = vector.load %arg3[%c0_3, %c0_4] : memref<1x128xf32, #tpu.memory_space<vmem>>, vector<1x128xf32>
    %4 = vector.broadcast %3 : vector<1x128xf32> to vector<8x128xf32>
    %5 = arith.addf %2, %4 : vector<8x128xf32>
    %cst_5 = arith.constant 2.000000e+01 : f32
    %6 = vector.broadcast %cst_5 : f32 to vector<8x128xf32>
    %7 = arith.cmpf ogt, %5, %6 : vector<8x128xf32>
    %cst_6 = arith.constant 2.000000e+01 : f32
    %8 = vector.broadcast %cst_6 : f32 to vector<8x128xf32>
    %9 = arith.minimumf %5, %8 : vector<8x128xf32>
    %10 = math.exp %9 : vector<8x128xf32>
    %11 = math.log1p %10 : vector<8x128xf32>
    %12 = arith.select %7, %5, %11 : vector<8x128xi1>, vector<8x128xf32>
    %cst_7 = arith.constant 1.000000e-07 : f32
    %13 = vector.broadcast %cst_7 : f32 to vector<8x128xf32>
    %14 = arith.addf %12, %13 : vector<8x128xf32>
    %15 = tpu.iota {dimensions = array<i32: 1>} : vector<8x128xi32>
    %c16_i32 = arith.constant 16 : i32
    %16 = vector.broadcast %c16_i32 : i32 to vector<8x128xi32>
    %17 = arith.cmpi sge, %15, %16 : vector<8x128xi32>
    %c32_i32 = arith.constant 32 : i32
    %18 = vector.broadcast %c32_i32 : i32 to vector<8x128xi32>
    %19 = arith.cmpi slt, %15, %18 : vector<8x128xi32>
    %20 = arith.andi %17, %19 : vector<8x128xi1>
    %21 = arith.select %20, %14, %5 : vector<8x128xi1>, vector<8x128xf32>
    %c0_8 = arith.constant 0 : index
    %c0_9 = arith.constant 0 : index
    %22 = vector.load %arg4[%c0_8, %c0_9] : memref<8x128xf32, #tpu.memory_space<vmem>>, vector<8x128xf32>
    tpu.vector_store %arg4[%c0_8, %c0_9], %21 {strides = array<i32>} : memref<8x128xf32, #tpu.memory_space<vmem>>, vector<8x128xf32>,
    return
  }
  func.func @transform_0(%arg0: i32) -> (i32, i32) {
    %c0_i32 = arith.constant 0 : i32
    %c0_i32_0 = arith.constant 0 : i32
    return %arg0, %c0_i32 : i32, i32
  }
  func.func @transform_1(%arg0: i32) -> (i32, i32) {
    %c0_i32 = arith.constant 0 : i32
    %c0_i32_0 = arith.constant 0 : i32
    %c0_i32_1 = arith.constant 0 : i32
    return %c0_i32, %c0_i32_0 : i32, i32
  }
  func.func @transform_2(%arg0: i32) -> (i32, i32) {
    %c0_i32 = arith.constant 0 : i32
    %c0_i32_0 = arith.constant 0 : i32
    %c0_i32_1 = arith.constant 0 : i32
    return %c0_i32, %c0_i32_0 : i32, i32
  }
  func.func @transform_3(%arg0: i32) -> (i32, i32) {
    %c0_i32 = arith.constant 0 : i32
    %c0_i32_0 = arith.constant 0 : i32
    return %arg0, %c0_i32 : i32, i32
  }
}

</mosaic_0001>

<llo_original>
// kernel: tpu_custom_call.1
$region0: #{tpu_custom_call.1}
  #allocation0 [shape = 'u32[]', space=smem, size = 0x4, offset = 0x4, fixed_abs, tag = 'smem constant byte address 0x4 - core index']
  #allocation1 [shape = 'u32[144,128]{1,0:T(1,128)}', space=vmem, size = 0x12000, scoped, tag = 'internal scratch']
  %s0 = inlined_call_operand.hbm [shape: f32[8,32], index: 0, kind: input, shape index: {}]
  %s1 = inlined_call_operand.hbm [shape: f32[32,128], index: 1, kind: input, shape index: {}]
  %s2 = inlined_call_operand.vmem [shape: f32[1,128], index: 2, kind: input, shape index: {}]
  %s3 = inlined_call_operand.hbm [shape: f32[8,128], index: 3, kind: output, shape index: {}]
  %s4 = sld [smem:[#allocation0]]
  $region30: #{tpu_custom_call.1} parent=0
    _
  %s6 = ssub.s32 1, %s4
  %s7 = scalar_select 0, %s6, %s4
  $region1: #{tpu_custom_call.1} parent=0
    #allocation2 [shape = 'u8[4096]{0}', space=vmem, size = 0x1000, scoped, tag = 'input window, operand 0, single buffered']
    #allocation3 [shape = 's32[1]{0}', space=sflag, size = 0x4, scoped, tag = 'scoped memory for tpu_custom_call.1']
    #allocation4 [shape = 's32[1]{0}', space=sflag, size = 0x4, scoped, tag = 'scoped memory for tpu_custom_call.1']
    #allocation5 [shape = 'u8[16384]{0}', space=vmem, size = 0x4000, scoped, tag = 'input window, operand 1, single buffered']
    #allocation6 [shape = 's32[1]{0}', space=sflag, size = 0x4, scoped, tag = 'scoped memory for tpu_custom_call.1']
    #allocation7 [shape = 'u8[4096]{0}', space=vmem, size = 0x1000, scoped, tag = 'output window, operand 0, single buffered']
    %8 = vsyncpa [#allocation3], 0
    %9 = vsyncpa [#allocation6], 0
    %10 = vsyncpa [#allocation4], 0
    // Predicated region
    $region2: #{tpu_custom_call.1} parent=1 // pred_check
      _
    $region3: #{tpu_custom_call.1} parent=1 // pred_check_branch
      %12 = sbr.rel (0) target = $region5
    $region4: #{tpu_custom_call.1} parent=1 // pred_region
      %s14 = ssub.s32 128, 128
      %15 = vsyncadd [#allocation3], %s14
      %s17 = sshll.u32 [#allocation2], 4
      %s18 = int_to_ptr.vmem [resolvable:$true] %s17
      %20 = dma.hbm_to_vmem [thread:$0]  %s0, 128, %s18, [#allocation3]
    $region5: #{tpu_custom_call.1} parent=1 // pred_fallthru
      _
    // Predicated region
    $region6: #{tpu_custom_call.1} parent=1 // pred_check
      _
    $region7: #{tpu_custom_call.1} parent=1 // pred_check_branch
      %22 = sbr.rel (0) target = $region9
    $region8: #{tpu_custom_call.1} parent=1 // pred_region
      %s24 = ssub.s32 512, 512
      %25 = vsyncadd [#allocation6], %s24
      %s26 = sshll.u32 [#allocation5], 4
      %s27 = int_to_ptr.vmem [resolvable:$true] %s26
      %32 = dma.hbm_to_vmem [thread:$0]  %s1, 512, %s27, [#allocation6], 128, 128, 8
    $region9: #{tpu_custom_call.1} parent=1 // pred_fallthru
      _
    // Predicated region
    $region10: #{tpu_custom_call.1} parent=1 // pred_check
      _
    $region11: #{tpu_custom_call.1} parent=1 // pred_check_branch
      %34 = sbr.rel (0) target = $region13
    $region12: #{tpu_custom_call.1} parent=1 // pred_region
      _
    $region13: #{tpu_custom_call.1} parent=1 // pred_fallthru
      _
    // Predicated region
    $region14: #{tpu_custom_call.1} parent=1 // pred_check
      _
    $region15: #{tpu_custom_call.1} parent=1 // pred_check_branch
      %36 = sbr.rel (0) target = $region17
    $region16: #{tpu_custom_call.1} parent=1 // pred_region
      %37 = dma.done [#allocation3], 128
    $region17: #{tpu_custom_call.1} parent=1 // pred_fallthru
      _
    // Predicated region
    $region18: #{tpu_custom_call.1} parent=1 // pred_check
      _
    $region19: #{tpu_custom_call.1} parent=1 // pred_check_branch
      %39 = sbr.rel (0) target = $region21
    $region20: #{tpu_custom_call.1} parent=1 // pred_region
      %40 = dma.done [#allocation6], 512
    $region21: #{tpu_custom_call.1} parent=1 // pred_fallthru
      _
    %v41 = vld [vmem:[#allocation2] sm:$0xff]
    %v42 = vld [vmem:[#allocation5] sm:$0xff]
    %v43 = vld [vmem:[#allocation5 + $0x8] sm:$0xff]
    %v44 = vld [vmem:[#allocation5 + $0x10] sm:$0xff]
    %v45 = vld [vmem:[#allocation5 + $0x18] sm:$0xff]
    %v46 = vld [vmem:[%s2] sm:$0x1]
    %v48 = vlaneseq
    %v49 = vshrl.u32 %v48, 7
    %v50 = vsub.s32 0, %v49
    %v51 = vrot.slane %v46, %v50
    %vm53 = vcmask 261120
    %v55 = vsel %vm53, %v41, 0
    %57 = vmatprep.subr.mxu0 0.0
    %58 = vmatpush1.msra.mxu0 %v42
    %59 = vmatprep.subr.mxu0 0.0
    %60 = vmatpush1.msra.mxu0 %v43
    %61 = vmatprep.subr.mxu0 0.0
    %62 = vmatpush1.msra.mxu0 %v44
    %63 = vmatprep.subr.mxu0 0.0
    %64 = vmatpush1.msra.mxu0 %v45
    %65 = vmatprep.subr.mxu0 0.0
    %66 = vmatpush1.msra.mxu0 0.0
    %67 = vmatprep.subr.mxu0 0.0
    %68 = vmatpush1.msra.mxu0 0.0
    %69 = vmatprep.subr.mxu0 0.0
    %70 = vmatpush1.msra.mxu0 0.0
    %71 = vmatprep.subr.mxu0 0.0
    %72 = vmatpush1.msra.mxu0 0.0
    %73 = vmatprep.subr.mxu0 0.0
    %74 = vmatpush1.msra.mxu0 0.0
    %75 = vmatprep.subr.mxu0 0.0
    %76 = vmatpush1.msra.mxu0 0.0
    %77 = vmatprep.subr.mxu0 0.0
    %78 = vmatpush1.msra.mxu0 0.0
    %79 = vmatprep.subr.mxu0 0.0
    %80 = vmatpush1.msra.mxu0 0.0
    %81 = vmatprep.subr.mxu0 0.0
    %82 = vmatpush1.msra.mxu0 0.0
    %83 = vmatprep.subr.mxu0 0.0
    %84 = vmatpush1.msra.mxu0 0.0
    %85 = vmatprep.subr.mxu0 0.0
    %86 = vmatpush1.msra.mxu0 0.0
    %87 = vmatprep.subr.mxu0 0.0
    %88 = vmatpush1.msra.mxu0 0.0
    %89 = vmatprep.subr.mxu0 0.0
    %90 = vmatpush1.msra.mxu0 0.0
    %91 = vmatprep.subr.mxu0 0.0
    %92 = vmatpush1.msra.mxu0 0.0
    %93 = vmatprep.subr.mxu0 0.0
    %94 = vmatpush1.msra.mxu0 0.0
    %95 = vmatprep.subr.mxu0 0.0
    %96 = vmatpush1.msra.mxu0 0.0
    %97 = vmatprep.subr.mxu0 0.0
    %98 = vmatpush1.msra.mxu0 0.0
    %99 = vmatprep.subr.mxu0 0.0
    %100 = vmatpush1.msra.mxu0 0.0
    %101 = vmatprep.subr.mxu0 0.0
    %102 = vmatpush1.msra.mxu0 0.0
    %103 = vmatprep.subr.mxu0 0.0
    %104 = vmatpush1.msra.mxu0 0.0
    %105 = vmatprep.subr.mxu0 0.0
    %106 = vmatpush1.msra.mxu0 0.0
    %107 = vmatprep.subr.mxu0 0.0
    %108 = vmatpush1.msra.mxu0 0.0
    %109 = vmatprep.subr.mxu0 0.0
    %110 = vmatpush1.msra.mxu0 0.0
    %111 = vmatprep.subr.mxu0 0.0
    %112 = vmatpush1.msra.mxu0 0.0
    %113 = vmatprep.subr.mxu0 0.0
    %114 = vmatpush1.msra.mxu0 0.0
    %115 = vmatprep.subr.mxu0 0.0
    %116 = vmatpush1.msra.mxu0 0.0
    %117 = vmatprep.subr.mxu0 0.0
    %118 = vmatpush1.msra.mxu0 0.0
    %119 = vmatprep.subr.mxu0 0.0
    %120 = vmatpush1.msra.mxu0 0.0
    %121 = vmatprep.mubr.f32.mxu0 0.0
    %122 = vmatmul.mubr.f32.gmra.mrb[0].mxu0 %v55
    %v123 = vpop.f32.mrb[0].mxu0
    %v124 = vadd.f32 %v51, %v123
    %v125 = vpop.f32.mrb[0].mxu0
    %126 = vdwg.mxu0
    %vm127 = vcmp.gt.f32.partialorder %v124, 20.0
    %v128 = vmin.f32 %v124, 20.0
    %v129 = vmul.f32 %v128, 1.442695
    %v130 = vpow.pop %v129
    %v131 = vadd.f32 %v130, 1.0
    %v132 = vlog2.pop %v131
    %v133 = vmul.f32 %v132, 0.6931472
    %v134 = vmul.f32 -0.5, %v130
    %v135 = vadd.f32 %v134, 1.0
    %v136 = vmul.f32 %v135, %v130
    %v137 = vand.u32 2147483647, %v130
    %vm138 = vcmp.lt.f32.partialorder %v137, 0.0004427343
    %v139 = vsel %vm138, %v136, %v133
    %v140 = vsel %vm127, %v124, %v139
    %v141 = vadd.f32 %v140, 1e-07
    %v142 = vlaneseq
    %v143 = vand.u32 %v142, 127
    %vm144 = vcmp.ge.s32.totalorder %v143, 16
    %vm145 = vcmp.lt.s32.totalorder %v143, 32
    %vm146 = vmand %vm144, %vm145
    %v147 = vsel %vm146, %v141, %v124
    %148 = vst [vmem:[#allocation7] sm:$0xff] %v147
    // Predicated region
    $region22: #{tpu_custom_call.1} parent=1 // pred_check
      _
    $region23: #{tpu_custom_call.1} parent=1 // pred_check_branch
      %150 = sbr.rel (0) target = $region25
    $region24: #{tpu_custom_call.1} parent=1 // pred_region
      %s152 = ssub.s32 128, 128
      %153 = vsyncadd [#allocation4], %s152
      %s155 = sshll.u32 [#allocation7], 4
      %s156 = int_to_ptr.vmem [resolvable:$true] %s155
      %158 = dma.vmem_to_hbm [thread:$0]  %s156, 128, %s3, [#allocation4]
    $region25: #{tpu_custom_call.1} parent=1 // pred_fallthru
      _
    // Predicated region
    $region26: #{tpu_custom_call.1} parent=1 // pred_check
      _
    $region27: #{tpu_custom_call.1} parent=1 // pred_check_branch
      %160 = sbr.rel (0) target = $region29
    $region28: #{tpu_custom_call.1} parent=1 // pred_region
      %161 = dma.done [#allocation4], 128
    $region29: #{tpu_custom_call.1} parent=1 // pred_fallthru
      _
    %162 = vsyncpa [#allocation3], 1
    %163 = vsyncpa [#allocation6], 1
    %164 = vsyncpa [#allocation4], 1

</llo_original>
